<compile_context>
chip_gen: v7x
topology: tpu7x:2x2x1
jax: 0.10.0
libtpu: 0.0.40
codegen_flags: <defaults>
</compile_context>

<pallas_src>
import jax
import jax.numpy as jnp
from jax import lax
from jax.experimental import pallas as pl
from jax.experimental.pallas import tpu as pltpu


def make_link_predictor_kernel(product):
    """Kernel closed over the (static) product mode; layer count is inferred
    from the number of weight/bias refs."""

    def kernel(xi_ref, xj_ref, *refs):
        out_ref = refs[-1]
        wb = refs[:-1]                       # weight/bias refs, layer by layer

        # Natural (tile_b, d_in) blocks; upcast bf16 -> f32 immediately after
        # load (v5e has no bf16 VPU/EUP path; the MXU is not the bottleneck).
        xi = xi_ref[...].astype(jnp.float32)
        xj = xj_ref[...].astype(jnp.float32)

        def dot_feat(w, x):
            # (out_f, d) x (tile_b, d) -> (out_f, tile_b): contract the feature
            # axis of BOTH operands (i.e. W @ x^T on the MXU).  No explicit
            # transpose of the streamed input is ever materialized.
            return lax.dot_general(w, x, (((1,), (1,)), ((), ())),
                                   preferred_element_type=jnp.float32)

        if product == "concat":
            # W0 split wrapper-side -> avoids a (2*d_in, tile_b) concat copy.
            w0a, w0b, b0 = wb[0][...], wb[1][...], wb[2][...]
            x = dot_feat(w0a, xi) + dot_feat(w0b, xj) + b0
            rest = wb[3:]
        else:
            if product == "dot":
                p = xi * xj
            elif product == "euclidean":
                p = jnp.abs(xi - xj)         # sqrt((xi - xj)**2) == |xi - xj|
            else:
                raise ValueError(f"unknown product: {product}")
            w0, b0 = wb[0][...], wb[1][...]
            x = dot_feat(w0, p) + b0
            rest = wb[2:]

        # Hidden activations; dropout is identity at inference.
        # TODO(synk): training-mode dropout (pltpu.prng_random_bits mask) not implemented.
        x = jnp.maximum(x, 0.0)
        n_rest = len(rest) // 2              # remaining Linear layers (>= 1)
        for l in range(n_rest - 1):          # middle hidden layers, batch on lanes
            w, b = rest[2 * l][...], rest[2 * l + 1][...]
            x = jnp.maximum(
                jnp.dot(w, x, preferred_element_type=jnp.float32) + b, 0.0)

        w, b = rest[-2][...], rest[-1][...]
        logits = jnp.dot(w, x, preferred_element_type=jnp.float32) + b
        # f32 sigmoid: exp on the EUP; exact reciprocal keeps parity with the
        # reference (out_ch is tiny, so approx=True would buy nothing here).
        out_ref[...] = pl.reciprocal(1.0 + jnp.exp(-logits), approx=False)

    return kernel


def _choose_tile_b(B, d_in, out_ch, max_feat, in_bytes, *,
                   vmem_budget_bytes=24 << 20, max_tile=2048, min_tile=128):
    """Pick the batch tile from a VMEM budget (v7x-safe), capped at 2048
    (HBM roofline saturates >= ~512) and at ~B/2 so the grid has >= 2 steps
    for v7x's two TensorCores.  Always a multiple of 128."""
    per_row = (2 * 2 * d_in * in_bytes       # both inputs, double-buffered
               + 2 * out_ch * 4              # output block, double-buffered
               + 6 * max_feat * 4)           # live f32 intermediates in the body
    tile = vmem_budget_bytes // max(per_row, 1)
    half_b = 128 * pl.cdiv(pl.cdiv(B, 2), 128)   # ~B/2 rounded up to 128
    tile = min(tile, max_tile, max(half_b, min_tile))
    return max(min_tile, (tile // 128) * 128)


def link_predictor_forward(x_i, x_j, weights, biases, *, product="dot",
                           tile_b=None, input_dtype=jnp.bfloat16):
    """x_i, x_j: (B, in_channels); weights[l]: (out_f, in_f) (PyTorch layout);
    biases[l]: (out_f,).  Returns sigmoid(MLP(product(x_i, x_j))), shape
    (B, out_channels), computed in f32 (inputs carried as `input_dtype` in HBM)."""
    if product not in ("dot", "concat", "euclidean"):
        raise ValueError(f"unknown product: {product}")
    B, d_in = x_i.shape
    assert x_j.shape == (B, d_in)
    assert len(weights) >= 2, "module always has >= 2 Linear layers"
    out_ch = int(weights[-1].shape[0])
    max_feat = max([d_in] + [int(w.shape[0]) for w in weights])

    in_bytes = jnp.dtype(input_dtype).itemsize
    if tile_b is None:
        tile_b = _choose_tile_b(B, d_in, out_ch, max_feat, in_bytes)
    assert tile_b % 128 == 0

    grid = pl.cdiv(B, tile_b)
    b_pad = grid * tile_b

    # Ideally the caller already stores features in bf16; the cast is then a no-op.
    xi = x_i.astype(input_dtype)
    xj = x_j.astype(input_dtype)
    if b_pad != B:
        # Zero-pad the final tile instead of constraining the batch size.
        xi = jnp.pad(xi, ((0, b_pad - B), (0, 0)))
        xj = jnp.pad(xj, ((0, b_pad - B), (0, 0)))

    # Weights / biases stay f32 (tiny, resident in VMEM across the whole grid).
    # (d_in / hidden here are already multiples of 8; pad them if a real model isn't.)
    w32 = [w.astype(jnp.float32) for w in weights]
    b32 = [b.astype(jnp.float32).reshape(-1, 1) for b in biases]
    if product == "concat":
        assert w32[0].shape[1] == 2 * d_in
        wb_args = [w32[0][:, :d_in], w32[0][:, d_in:], b32[0]]
    else:
        assert w32[0].shape[1] == d_in
        wb_args = [w32[0], b32[0]]
    for l in range(1, len(weights)):
        wb_args += [w32[l], b32[l]]

    args = [xi, xj] + wb_args
    in_specs = [pl.BlockSpec((tile_b, d_in), lambda i: (i, 0)),
                pl.BlockSpec((tile_b, d_in), lambda i: (i, 0))]
    in_specs += [pl.BlockSpec(a.shape, lambda i: (0, 0)) for a in wb_args]

    # VMEM footprint estimate -> bump the scoped limit only if we would exceed
    # the smallest default (16 MiB on v5e); cap well below v7x's 64 MiB.
    wb_bytes = sum(int(a.size) * 4 for a in wb_args)
    vmem_est = (2 * 2 * tile_b * d_in * in_bytes + 2 * tile_b * out_ch * 4
                + 2 * wb_bytes + 6 * tile_b * max_feat * 4)
    cp = dict(dimension_semantics=("parallel",))
    if vmem_est > (16 << 20):
        cp["vmem_limit_bytes"] = min(48 << 20, max(32 << 20, int(vmem_est * 3 // 2)))

    out_t = pl.pallas_call(
        make_link_predictor_kernel(product),
        out_shape=jax.ShapeDtypeStruct((out_ch, b_pad), jnp.float32),
        grid=(grid,),
        in_specs=in_specs,
        out_specs=pl.BlockSpec((out_ch, tile_b), lambda i: (0, i)),   # lane-dense
        compiler_params=pltpu.CompilerParams(**cp),
    )(*args)
    return out_t[:, :B].T                    # (B, out_channels); tiny slice + transpose


def link_predictor_ref(x_i, x_j, weights, biases, product, input_dtype=jnp.bfloat16):
    """Pure-JAX reference mirroring the PyTorch forward (eval mode) with the
    same HBM input dtype as the kernel."""
    x_i = x_i.astype(input_dtype).astype(jnp.float32)
    x_j = x_j.astype(input_dtype).astype(jnp.float32)
    if product == "concat":
        x = jnp.concatenate([x_i, x_j], axis=1)
    elif product == "dot":
        x = x_i * x_j
    elif product == "euclidean":
        x = jnp.sqrt((x_i - x_j) ** 2)
    hp = lax.Precision.HIGHEST
    for w, b in zip(weights[:-1], biases[:-1]):
        x = jax.nn.relu(jnp.dot(x, w.T, precision=hp) + b)
    x = jnp.dot(x, weights[-1].T, precision=hp) + biases[-1]
    return jax.nn.sigmoid(x)


if __name__ == "__main__":
    # Small module-consistent shapes; B=384 is deliberately not a multiple of
    # the auto-chosen tile (256) so the cdiv + zero-padding path and a 2-step
    # "parallel" grid are both exercised.
    B = 384
    in_channels = 32
    hidden = 32
    out_channels = 1
    num_layers = 3

    key = jax.random.PRNGKey(0)
    kxi, kxj, kw = jax.random.split(key, 3)
    x_i = jax.random.normal(kxi, (B, in_channels), dtype=jnp.float32)
    x_j = jax.random.normal(kxj, (B, in_channels), dtype=jnp.float32)

    def make_params(first_in, rng):
        dims = [first_in] + [hidden] * (num_layers - 1) + [out_channels]
        ws, bs = [], []
        for l in range(num_layers):
            rng, kw_, kb_ = jax.random.split(rng, 3)
            fan_in, fan_out = dims[l], dims[l + 1]
            ws.append(jax.random.normal(kw_, (fan_out, fan_in), jnp.float32)
                      / jnp.sqrt(float(fan_in)))
            bs.append(0.1 * jax.random.normal(kb_, (fan_out,), jnp.float32))
        return ws, bs

    w_pair, b_pair = make_params(in_channels, kw)                       # dot / euclidean
    w_cat, b_cat = make_params(2 * in_channels, jax.random.fold_in(kw, 1))  # concat

    for prod, (ws, bs) in (("dot", (w_pair, b_pair)),
                           ("euclidean", (w_pair, b_pair)),
                           ("concat", (w_cat, b_cat))):
        out = link_predictor_forward(x_i, x_j, ws, bs, product=prod)
        out = jax.block_until_ready(out)
        ref = link_predictor_ref(x_i, x_j, ws, bs, prod)
        assert out.shape == (B, out_channels), (prod, out.shape)
        err = float(jnp.max(jnp.abs(out - ref)))
        assert jnp.allclose(out, ref, rtol=1e-4, atol=1e-4), (prod, err)

    print("KERNEL_OK")
</pallas_src>

<mosaic_0001>
module attributes {stable_mosaic.version = 11 : i64} {
  func.func @kernel(%arg0: i32, %arg1: memref<256x32xbf16, #tpu.memory_space<vmem>>, %arg2: memref<256x32xbf16, #tpu.memory_space<vmem>>, %arg3: memref<32x32xf32, #tpu.memory_space<vmem>>, %arg4: memref<32x1xf32, #tpu.memory_space<vmem>>, %arg5: memref<32x32xf32, #tpu.memory_space<vmem>>, %arg6: memref<32x1xf32, #tpu.memory_space<vmem>>, %arg7: memref<1x32xf32, #tpu.memory_space<vmem>>, %arg8: memref<1x1xf32, #tpu.memory_space<vmem>>, %arg9: memref<1x256xf32, #tpu.memory_space<vmem>>) attributes {dimension_semantics = [#tpu.dimension_semantics<parallel>], iteration_bounds = array<i64: 2>, scalar_prefetch = 0 : i64, scratch_operands = 0 : i64, tpu.core_type = #tpu.core_type<tc>, window_params = [{transform_indices = @transform_0, window_bounds = array<i64: 256, 32>}, {transform_indices = @transform_1, window_bounds = array<i64: 256, 32>}, {pipeline_mode = #tpu.pipeline_mode<synchronous>, transform_indices = @transform_2, window_bounds = array<i64: 32, 32>}, {pipeline_mode = #tpu.pipeline_mode<synchronous>, transform_indices = @transform_3, window_bounds = array<i64: 32, 1>}, {pipeline_mode = #tpu.pipeline_mode<synchronous>, transform_indices = @transform_4, window_bounds = array<i64: 32, 32>}, {pipeline_mode = #tpu.pipeline_mode<synchronous>, transform_indices = @transform_5, window_bounds = array<i64: 32, 1>}, {pipeline_mode = #tpu.pipeline_mode<synchronous>, transform_indices = @transform_6, window_bounds = array<i64: 1, 32>}, {pipeline_mode = #tpu.pipeline_mode<synchronous>, transform_indices = @transform_7, window_bounds = array<i64: 1, 1>}, {transform_indices = @transform_8, window_bounds = array<i64: 1, 256>}]} {
    %c0 = arith.constant 0 : index
    %c0_0 = arith.constant 0 : index
    %0 = vector.load %arg1[%c0, %c0_0] : memref<256x32xbf16, #tpu.memory_space<vmem>>, vector<256x32xbf16>
    %1 = arith.extf %0 : vector<256x32xbf16> to vector<256x32xf32>
    %c0_1 = arith.constant 0 : index
    %c0_2 = arith.constant 0 : index
    %2 = vector.load %arg2[%c0_1, %c0_2] : memref<256x32xbf16, #tpu.memory_space<vmem>>, vector<256x32xbf16>
    %3 = arith.extf %2 : vector<256x32xbf16> to vector<256x32xf32>
    %4 = arith.mulf %1, %3 : vector<256x32xf32>
    %c0_3 = arith.constant 0 : index
    %c0_4 = arith.constant 0 : index
    %5 = vector.load %arg3[%c0_3, %c0_4] : memref<32x32xf32, #tpu.memory_space<vmem>>, vector<32x32xf32>
    %c0_5 = arith.constant 0 : index
    %c0_6 = arith.constant 0 : index
    %6 = vector.load %arg4[%c0_5, %c0_6] : memref<32x1xf32, #tpu.memory_space<vmem>>, vector<32x1xf32>
    %cst = arith.constant dense<0.000000e+00> : vector<32x256xf32>
    %7 = tpu.matmul %5, %4, %cst {dimension_numbers = #tpu.dot_dimension_numbers<[1], [1], [0], [0], [0, 0, 1, 0], [], []>} : vector<32x32xf32>, vector<256x32xf32>, vector<32x256xf32> -> vector<32x256xf32>
    %8 = vector.broadcast %6 : vector<32x1xf32> to vector<32x256xf32>
    %9 = arith.addf %7, %8 : vector<32x256xf32>
    %cst_7 = arith.constant 0.000000e+00 : f32
    %10 = vector.broadcast %cst_7 : f32 to vector<32x256xf32>
    %11 = arith.maximumf %9, %10 : vector<32x256xf32>
    %c0_8 = arith.constant 0 : index
    %c0_9 = arith.constant 0 : index
    %12 = vector.load %arg5[%c0_8, %c0_9] : memref<32x32xf32, #tpu.memory_space<vmem>>, vector<32x32xf32>
    %c0_10 = arith.constant 0 : index
    %c0_11 = arith.constant 0 : index
    %13 = vector.load %arg6[%c0_10, %c0_11] : memref<32x1xf32, #tpu.memory_space<vmem>>, vector<32x1xf32>
    %cst_12 = arith.constant dense<0.000000e+00> : vector<32x256xf32>
    %14 = tpu.matmul %12, %11, %cst_12 {dimension_numbers = #tpu.dot_dimension_numbers<[1], [0], [0], [1], [0, 0, 1, 1], [], []>} : vector<32x32xf32>, vector<32x256xf32>, vector<32x256xf32> -> vector<32x256xf32>
    %15 = vector.broadcast %13 : vector<32x1xf32> to vector<32x256xf32>
    %16 = arith.addf %14, %15 : vector<32x256xf32>
    %cst_13 = arith.constant 0.000000e+00 : f32
    %17 = vector.broadcast %cst_13 : f32 to vector<32x256xf32>
    %18 = arith.maximumf %16, %17 : vector<32x256xf32>
    %c0_14 = arith.constant 0 : index
    %c0_15 = arith.constant 0 : index
    %19 = vector.load %arg7[%c0_14, %c0_15] : memref<1x32xf32, #tpu.memory_space<vmem>>, vector<1x32xf32>
    %c0_16 = arith.constant 0 : index
    %c0_17 = arith.constant 0 : index
    %20 = vector.load %arg8[%c0_16, %c0_17] : memref<1x1xf32, #tpu.memory_space<vmem>>, vector<1x1xf32>
    %cst_18 = arith.constant dense<0.000000e+00> : vector<1x256xf32>
    %21 = tpu.matmul %19, %18, %cst_18 {dimension_numbers = #tpu.dot_dimension_numbers<[1], [0], [0], [1], [0, 0, 1, 1], [], []>} : vector<1x32xf32>, vector<32x256xf32>, vector<1x256xf32> -> vector<1x256xf32>
    %22 = vector.broadcast %20 : vector<1x1xf32> to vector<1x256xf32>
    %23 = arith.addf %21, %22 : vector<1x256xf32>
    %cst_19 = arith.constant 0.000000e+00 : f32
    %24 = vector.broadcast %cst_19 : f32 to vector<1x256xf32>
    %25 = arith.subf %24, %23 : vector<1x256xf32>
    %26 = math.exp %25 : vector<1x256xf32>
    %cst_20 = arith.constant 1.000000e+00 : f32
    %27 = vector.broadcast %cst_20 : f32 to vector<1x256xf32>
    %28 = arith.addf %27, %26 : vector<1x256xf32>
    %29 = tpu.reciprocal %28 : vector<1x256xf32> -> vector<1x256xf32>
    %c0_21 = arith.constant 0 : index
    %c0_22 = arith.constant 0 : index
    %30 = vector.load %arg9[%c0_21, %c0_22] : memref<1x256xf32, #tpu.memory_space<vmem>>, vector<1x256xf32>
    tpu.vector_store %arg9[%c0_21, %c0_22], %29 {strides = array<i32>} : memref<1x256xf32, #tpu.memory_space<vmem>>, vector<1x256xf32>,
    return
  }
  func.func @transform_0(%arg0: i32) -> (i32, i32) {
    %c0_i32 = arith.constant 0 : i32
    %c0_i32_0 = arith.constant 0 : i32
    return %arg0, %c0_i32 : i32, i32
  }
  func.func @transform_1(%arg0: i32) -> (i32, i32) {
    %c0_i32 = arith.constant 0 : i32
    %c0_i32_0 = arith.constant 0 : i32
    return %arg0, %c0_i32 : i32, i32
  }
  func.func @transform_2(%arg0: i32) -> (i32, i32) {
    %c0_i32 = arith.constant 0 : i32
    %c0_i32_0 = arith.constant 0 : i32
    %c0_i32_1 = arith.constant 0 : i32
    return %c0_i32, %c0_i32_0 : i32, i32
  }
  func.func @transform_3(%arg0: i32) -> (i32, i32) {
    %c0_i32 = arith.constant 0 : i32
    %c0_i32_0 = arith.constant 0 : i32
    %c0_i32_1 = arith.constant 0 : i32
    return %c0_i32, %c0_i32_0 : i32, i32
  }
  func.func @transform_4(%arg0: i32) -> (i32, i32) {
    %c0_i32 = arith.constant 0 : i32
    %c0_i32_0 = arith.constant 0 : i32
    %c0_i32_1 = arith.constant 0 : i32
    return %c0_i32, %c0_i32_0 : i32, i32
  }
  func.func @transform_5(%arg0: i32) -> (i32, i32) {
    %c0_i32 = arith.constant 0 : i32
    %c0_i32_0 = arith.constant 0 : i32
    %c0_i32_1 = arith.constant 0 : i32
    return %c0_i32, %c0_i32_0 : i32, i32
  }
  func.func @transform_6(%arg0: i32) -> (i32, i32) {
    %c0_i32 = arith.constant 0 : i32
    %c0_i32_0 = arith.constant 0 : i32
    %c0_i32_1 = arith.constant 0 : i32
    return %c0_i32, %c0_i32_0 : i32, i32
  }
  func.func @transform_7(%arg0: i32) -> (i32, i32) {
    %c0_i32 = arith.constant 0 : i32
    %c0_i32_0 = arith.constant 0 : i32
    %c0_i32_1 = arith.constant 0 : i32
    return %c0_i32, %c0_i32_0 : i32, i32
  }
  func.func @transform_8(%arg0: i32) -> (i32, i32) {
    %c0_i32 = arith.constant 0 : i32
    %c0_i32_0 = arith.constant 0 : i32
    return %c0_i32, %arg0 : i32, i32
  }
}

</mosaic_0001>

<llo_original>
// kernel: tpu_custom_call.1
$region0: #{tpu_custom_call.1}
  #allocation0 [shape = 'u32[]', space=smem, size = 0x4, offset = 0x4, fixed_abs, tag = 'smem constant byte address 0x4 - core index']
  #allocation1 [shape = 'u32[144,128]{1,0:T(1,128)}', space=vmem, size = 0x12000, scoped, tag = 'internal scratch']
  #allocation2 [shape = 'f32[1,1]{1,0:T(1,128)S(1)}', space=vmem, size = 0x200, scoped, tag = 'scoped memory for tpu_custom_call.1']
  %s0 = inlined_call_operand.vmem [shape: bf16[512,32], index: 0, kind: input, shape index: {}]
  %s1 = inlined_call_operand.vmem [shape: bf16[512,32], index: 1, kind: input, shape index: {}]
  %s2 = inlined_call_operand.vmem [shape: f32[32,32], index: 2, kind: input, shape index: {}]
  %s3 = inlined_call_operand.vmem [shape: f32[32,1], index: 3, kind: input, shape index: {}]
  %s4 = inlined_call_operand.vmem [shape: f32[32,32], index: 4, kind: input, shape index: {}]
  %s5 = inlined_call_operand.vmem [shape: f32[32,1], index: 5, kind: input, shape index: {}]
  %s6 = inlined_call_operand.vmem [shape: f32[1,32], index: 6, kind: input, shape index: {}]
  %s7 = inlined_call_operand.<no memory space> [shape: f32[1,1], index: 7, kind: input, shape index: {}]
  %s8 = inlined_call_operand.hbm [shape: f32[1,512], index: 8, kind: output, shape index: {}]
  %s9 = sld [smem:[#allocation0]]
  $region65: #{tpu_custom_call.1} parent=0
    _
  %s11 = ssub.s32 1, %s9
  %s12 = scalar_select 0, %s11, %s9
  %v13 = vstv %s7
  %14 = vst [vmem:[#allocation2] sm:$0x1] %v13
  $region1: #{tpu_custom_call.1} parent=0
    #allocation3 [shape = 'u8[2048]{0}', space=vmem, size = 0x800, scoped, tag = 'output window, operand 0']
    #allocation4 [shape = 's32[2]{0}', space=sflag, size = 0x8, scoped, tag = 'scoped memory for tpu_custom_call.1']
    %15 = vsyncpa [#allocation4], 0
    %s16 = scalar_lea.sflag [#allocation4], 1
    %17 = vsyncpa %s16, 0
    loop: start=0, step=1, limit=4
    $region2: #{tpu_custom_call.1} parent=1 // loop_pre_header
      _
    $region3: #{tpu_custom_call.1} parent=1 // loop_header
      %s19 = sphi 0, %s23
      %p20 = scmp.ge.s32.totalorder %s19, 4
      %s29 = sphi 0, %s31
      %s32 = sphi 0, %s29
      %s33 = sphi 0, %s32
      %s49 = sphi 0, %s33
      %s55 = sphi 0, %s57
      %s58 = sphi 0, %s55
      %s59 = sphi 0, %s58
      %s75 = sphi 0, %s59
      %s79 = sphi 0, %s79
      %s81 = sphi 0, %s79
      %s82 = sphi 0, %s81
      %s96 = sphi 0, %s82
      %s100 = sphi 0, %s100
      %s102 = sphi 0, %s100
      %s103 = sphi 0, %s102
      %s117 = sphi 0, %s103
      %s121 = sphi 0, %s121
      %s123 = sphi 0, %s121
      %s124 = sphi 0, %s123
      %s138 = sphi 0, %s124
      %s142 = sphi 0, %s142
      %s144 = sphi 0, %s142
      %s145 = sphi 0, %s144
      %s159 = sphi 0, %s145
      %s163 = sphi 0, %s163
      %s165 = sphi 0, %s163
      %s166 = sphi 0, %s165
      %s180 = sphi 0, %s166
      %s184 = sphi 0, %s184
      %s186 = sphi 0, %s184
      %s187 = sphi 0, %s186
      %s201 = sphi 0, %s187
      %s207 = sphi 0, %s209
      %s210 = sphi 0, %s207
      %s211 = sphi 0, %s210
      %s227 = sphi 0, %s211
    $region4: #{tpu_custom_call.1} parent=1 // loop_header_branch
      %22 = sbr.rel (%p20) target = $region8
    $region5: #{tpu_custom_call.1} parent=1 // loop_body
      %s24 = ssub.s32 %s19, 1
      %s25 = ssub.s32 %s19, 2
      %s26 = sadd.s32 %s19, 1
      %s27 = ssub.s32 %s19, %s26
      %p28 = scmp.eq.s32.totalorder %s27, 0
      %s30 = sadd.s32 %s29, 1
      %s31 = scalar_select %p28, %s29, %s30
      %p34 = pneg %p28
      %p35 = scmp.eq.s32.totalorder %s19, 1
      %p36 = por %p34, %p35
      %p37 = scmp.ne.s32.totalorder %s29, %s32
      %p38 = scmp.eq.s32.totalorder %s19, 0
      %p39 = por %p37, %p38
      %p40 = scmp.ne.s32.totalorder %s29, %s32
      %p41 = scmp.eq.s32.totalorder %s24, 1
      %p42 = por %p40, %p41
      %p43 = scmp.ne.s32.totalorder %s32, %s33
      %p44 = scmp.eq.s32.totalorder %s24, 0
      %p45 = por %p43, %p44
      %p46 = scmp.ne.s32.totalorder %s32, %s33
      %p47 = scmp.eq.s32.totalorder %s25, 1
      %p48 = por %p46, %p47
      %p50 = scmp.ne.s32.totalorder %s33, %s49
      %p51 = scmp.eq.s32.totalorder %s25, 0
      %p52 = por %p50, %p51
      %s53 = ssub.s32 %s19, %s26
      %p54 = scmp.eq.s32.totalorder %s53, 0
      %s56 = sadd.s32 %s55, 1
      %s57 = scalar_select %p54, %s55, %s56
      %p60 = pneg %p54
      %p61 = scmp.eq.s32.totalorder %s19, 1
      %p62 = por %p60, %p61
      %p63 = scmp.ne.s32.totalorder %s55, %s58
      %p64 = scmp.eq.s32.totalorder %s19, 0
      %p65 = por %p63, %p64
      %p66 = scmp.ne.s32.totalorder %s55, %s58
      %p67 = scmp.eq.s32.totalorder %s24, 1
      %p68 = por %p66, %p67
      %p69 = scmp.ne.s32.totalorder %s58, %s59
      %p70 = scmp.eq.s32.totalorder %s24, 0
      %p71 = por %p69, %p70
      %p72 = scmp.ne.s32.totalorder %s58, %s59
      %p73 = scmp.eq.s32.totalorder %s25, 1
      %p74 = por %p72, %p73
      %p76 = scmp.ne.s32.totalorder %s59, %s75
      %p77 = scmp.eq.s32.totalorder %s25, 0
      %p78 = por %p76, %p77
      %s80 = sadd.s32 %s79, 1
      %p83 = scmp.eq.s32.totalorder %s19, 1
      %p84 = scmp.ne.s32.totalorder %s79, %s81
      %p85 = scmp.eq.s32.totalorder %s19, 0
      %p86 = por %p84, %p85
      %p87 = scmp.ne.s32.totalorder %s79, %s81
      %p88 = scmp.eq.s32.totalorder %s24, 1
      %p89 = por %p87, %p88
      %p90 = scmp.ne.s32.totalorder %s81, %s82
      %p91 = scmp.eq.s32.totalorder %s24, 0
      %p92 = por %p90, %p91
      %p93 = scmp.ne.s32.totalorder %s81, %s82
      %p94 = scmp.eq.s32.totalorder %s25, 1
      %p95 = por %p93, %p94
      %p97 = scmp.ne.s32.totalorder %s82, %s96
      %p98 = scmp.eq.s32.totalorder %s25, 0
      %p99 = por %p97, %p98
      %s101 = sadd.s32 %s100, 1
      %p104 = scmp.eq.s32.totalorder %s19, 1
      %p105 = scmp.ne.s32.totalorder %s100, %s102
      %p106 = scmp.eq.s32.totalorder %s19, 0
      %p107 = por %p105, %p106
      %p108 = scmp.ne.s32.totalorder %s100, %s102
      %p109 = scmp.eq.s32.totalorder %s24, 1
      %p110 = por %p108, %p109
      %p111 = scmp.ne.s32.totalorder %s102, %s103
      %p112 = scmp.eq.s32.totalorder %s24, 0
      %p113 = por %p111, %p112
      %p114 = scmp.ne.s32.totalorder %s102, %s103
      %p115 = scmp.eq.s32.totalorder %s25, 1
      %p116 = por %p114, %p115
      %p118 = scmp.ne.s32.totalorder %s103, %s117
      %p119 = scmp.eq.s32.totalorder %s25, 0
      %p120 = por %p118, %p119
      %s122 = sadd.s32 %s121, 1
      %p125 = scmp.eq.s32.totalorder %s19, 1
      %p126 = scmp.ne.s32.totalorder %s121, %s123
      %p127 = scmp.eq.s32.totalorder %s19, 0
      %p128 = por %p126, %p127
      %p129 = scmp.ne.s32.totalorder %s121, %s123
      %p130 = scmp.eq.s32.totalorder %s24, 1
      %p131 = por %p129, %p130
      %p132 = scmp.ne.s32.totalorder %s123, %s124
      %p133 = scmp.eq.s32.totalorder %s24, 0
      %p134 = por %p132, %p133
      %p135 = scmp.ne.s32.totalorder %s123, %s124
      %p136 = scmp.eq.s32.totalorder %s25, 1
      %p137 = por %p135, %p136
      %p139 = scmp.ne.s32.totalorder %s124, %s138
      %p140 = scmp.eq.s32.totalorder %s25, 0
      %p141 = por %p139, %p140
      %s143 = sadd.s32 %s142, 1
      %p146 = scmp.eq.s32.totalorder %s19, 1
      %p147 = scmp.ne.s32.totalorder %s142, %s144
      %p148 = scmp.eq.s32.totalorder %s19, 0
      %p149 = por %p147, %p148
      %p150 = scmp.ne.s32.totalorder %s142, %s144
      %p151 = scmp.eq.s32.totalorder %s24, 1
      %p152 = por %p150, %p151
      %p153 = scmp.ne.s32.totalorder %s144, %s145
      %p154 = scmp.eq.s32.totalorder %s24, 0
      %p155 = por %p153, %p154
      %p156 = scmp.ne.s32.totalorder %s144, %s145
      %p157 = scmp.eq.s32.totalorder %s25, 1
      %p158 = por %p156, %p157
      %p160 = scmp.ne.s32.totalorder %s145, %s159
      %p161 = scmp.eq.s32.totalorder %s25, 0
      %p162 = por %p160, %p161
      %s164 = sadd.s32 %s163, 1
      %p167 = scmp.eq.s32.totalorder %s19, 1
      %p168 = scmp.ne.s32.totalorder %s163, %s165
      %p169 = scmp.eq.s32.totalorder %s19, 0
      %p170 = por %p168, %p169
      %p171 = scmp.ne.s32.totalorder %s163, %s165
      %p172 = scmp.eq.s32.totalorder %s24, 1
      %p173 = por %p171, %p172
      %p174 = scmp.ne.s32.totalorder %s165, %s166
      %p175 = scmp.eq.s32.totalorder %s24, 0
      %p176 = por %p174, %p175
      %p177 = scmp.ne.s32.totalorder %s165, %s166
      %p178 = scmp.eq.s32.totalorder %s25, 1
      %p179 = por %p177, %p178
      %p181 = scmp.ne.s32.totalorder %s166, %s180
      %p182 = scmp.eq.s32.totalorder %s25, 0
      %p183 = por %p181, %p182
      %s185 = sadd.s32 %s184, 1
      %p188 = scmp.eq.s32.totalorder %s19, 1
      %p189 = scmp.ne.s32.totalorder %s184, %s186
      %p190 = scmp.eq.s32.totalorder %s19, 0
      %p191 = por %p189, %p190
      %p192 = scmp.ne.s32.totalorder %s184, %s186
      %p193 = scmp.eq.s32.totalorder %s24, 1
      %p194 = por %p192, %p193
      %p195 = scmp.ne.s32.totalorder %s186, %s187
      %p196 = scmp.eq.s32.totalorder %s24, 0
      %p197 = por %p195, %p196
      %p198 = scmp.ne.s32.totalorder %s186, %s187
      %p199 = scmp.eq.s32.totalorder %s25, 1
      %p200 = por %p198, %p199
      %p202 = scmp.ne.s32.totalorder %s187, %s201
      %p203 = scmp.eq.s32.totalorder %s25, 0
      %p204 = por %p202, %p203
      %s205 = ssub.s32 %s19, %s26
      %p206 = scmp.eq.s32.totalorder %s205, 0
      %s208 = sadd.s32 %s207, 1
      %s209 = scalar_select %p206, %s207, %s208
      %p212 = pneg %p206
      %p213 = scmp.eq.s32.totalorder %s19, 1
      %p214 = por %p212, %p213
      %p215 = scmp.ne.s32.totalorder %s207, %s210
      %p216 = scmp.eq.s32.totalorder %s19, 0
      %p217 = por %p215, %p216
      %p218 = scmp.ne.s32.totalorder %s207, %s210
      %p219 = scmp.eq.s32.totalorder %s24, 1
      %p220 = por %p218, %p219
      %p221 = scmp.ne.s32.totalorder %s210, %s211
      %p222 = scmp.eq.s32.totalorder %s24, 0
      %p223 = por %p221, %p222
      %p224 = scmp.ne.s32.totalorder %s210, %s211
      %p225 = scmp.eq.s32.totalorder %s25, 1
      %p226 = por %p224, %p225
      %p228 = scmp.ne.s32.totalorder %s211, %s227
      %p229 = scmp.eq.s32.totalorder %s25, 0
      %p230 = por %p228, %p229
      %p231 = scmp.le.s32.totalorder 1, %s19
      %p232 = scmp.lt.s32.totalorder %s19, 3
      %p233 = pnand %p231, %p232
      %p234 = pneg %p233
      // Predicated region
      $region9: #{tpu_custom_call.1} parent=5 // pred_check
        _
      $region10: #{tpu_custom_call.1} parent=5 // pred_check_branch
        %236 = sbr.rel (%p233) target = $region12
      $region11: #{tpu_custom_call.1} parent=5 // pred_region
        %s237 = ssub.s32 %s19, 1
        // Predicated region
        $region13: #{tpu_custom_call.1} parent=11 // pred_check
          %p238 = pneg %p92
        $region14: #{tpu_custom_call.1} parent=11 // pred_check_branch
          %240 = sbr.rel (%p238) target = $region16
        $region15: #{tpu_custom_call.1} parent=11 // pred_region
          _
        $region16: #{tpu_custom_call.1} parent=11 // pred_fallthru
          _
        // Predicated region
        $region17: #{tpu_custom_call.1} parent=11 // pred_check
          %p241 = pneg %p113
        $region18: #{tpu_custom_call.1} parent=11 // pred_check_branch
          %243 = sbr.rel (%p241) target = $region20
        $region19: #{tpu_custom_call.1} parent=11 // pred_region
          _
        $region20: #{tpu_custom_call.1} parent=11 // pred_fallthru
          _
        // Predicated region
        $region21: #{tpu_custom_call.1} parent=11 // pred_check
          %p244 = pneg %p134
        $region22: #{tpu_custom_call.1} parent=11 // pred_check_branch
          %246 = sbr.rel (%p244) target = $region24
        $region23: #{tpu_custom_call.1} parent=11 // pred_region
          _
        $region24: #{tpu_custom_call.1} parent=11 // pred_fallthru
          _
        // Predicated region
        $region25: #{tpu_custom_call.1} parent=11 // pred_check
          %p247 = pneg %p155
        $region26: #{tpu_custom_call.1} parent=11 // pred_check_branch
          %249 = sbr.rel (%p247) target = $region28
        $region27: #{tpu_custom_call.1} parent=11 // pred_region
          _
        $region28: #{tpu_custom_call.1} parent=11 // pred_fallthru
          _
        // Predicated region
        $region29: #{tpu_custom_call.1} parent=11 // pred_check
          %p250 = pneg %p176
        $region30: #{tpu_custom_call.1} parent=11 // pred_check_branch
          %252 = sbr.rel (%p250) target = $region32
        $region31: #{tpu_custom_call.1} parent=11 // pred_region
          _
        $region32: #{tpu_custom_call.1} parent=11 // pred_fallthru
          _
        // Predicated region
        $region33: #{tpu_custom_call.1} parent=11 // pred_check
          %p253 = pneg %p197
        $region34: #{tpu_custom_call.1} parent=11 // pred_check_branch
          %255 = sbr.rel (%p253) target = $region36
        $region35: #{tpu_custom_call.1} parent=11 // pred_region
          _
        $region36: #{tpu_custom_call.1} parent=11 // pred_fallthru
          _
      $region12: #{tpu_custom_call.1} parent=5 // pred_fallthru
        _
      %p256 = scmp.lt.s32.totalorder %s19, 2
      // Predicated region
      $region37: #{tpu_custom_call.1} parent=5 // pred_check
        %p257 = pneg %p256
      $region38: #{tpu_custom_call.1} parent=5 // pred_check_branch
        %259 = sbr.rel (%p257) target = $region40
      $region39: #{tpu_custom_call.1} parent=5 // pred_region
        // Predicated region
        $region41: #{tpu_custom_call.1} parent=39 // pred_check
          %p260 = pneg %p39
        $region42: #{tpu_custom_call.1} parent=39 // pred_check_branch
          %262 = sbr.rel (%p260) target = $region44
        $region43: #{tpu_custom_call.1} parent=39 // pred_region
          %s263 = smul.u32 32, %s19
          %p264 = scmp.lt.s32.totalorder %s263, 63
          %s265 = scalar_select %p264, %s263, 63
          %s266 = smul.addr %s265, 4
          %s267 = scalar_lea.vmem %s0, %s266
          %s268 = smul.u32 32, %s19
        $region44: #{tpu_custom_call.1} parent=39 // pred_fallthru
          _
        // Predicated region
        $region45: #{tpu_custom_call.1} parent=39 // pred_check
          %p269 = pneg %p65
        $region46: #{tpu_custom_call.1} parent=39 // pred_check_branch
          %271 = sbr.rel (%p269) target = $region48
        $region47: #{tpu_custom_call.1} parent=39 // pred_region
          %s272 = smul.u32 32, %s19
          %p273 = scmp.lt.s32.totalorder %s272, 63
          %s274 = scalar_select %p273, %s272, 63
          %s275 = smul.addr %s274, 4
          %s276 = scalar_lea.vmem %s1, %s275
          %s277 = smul.u32 32, %s19
        $region48: #{tpu_custom_call.1} parent=39 // pred_fallthru
          _
      $region40: #{tpu_custom_call.1} parent=5 // pred_fallthru
        _
      %p278 = scmp.le.s32.totalorder 1, %s19
      %p279 = scmp.lt.s32.totalorder %s19, 3
      %p280 = pnand %p278, %p279
      %p281 = pneg %p280
      // Predicated region
      $region49: #{tpu_custom_call.1} parent=5 // pred_check
        _
      $region50: #{tpu_custom_call.1} parent=5 // pred_check_branch
        %283 = sbr.rel (%p280) target = $region52
      $region51: #{tpu_custom_call.1} parent=5 // pred_region
        %s284 = ssub.s32 %s19, 1
        %s285 = smul.u32 32, %s24
        %p286 = scmp.lt.s32.totalorder %s285, 63
        %s287 = scalar_select %p286, %s285, 63
        %s288 = smul.addr %s287, 4
        %s289 = scalar_lea.vmem %s0, %s288
        %p290 = pneg %p45
        %p291 = pneg %p42
        %s292 = smul.u32 32, %s24
        %p293 = scmp.lt.s32.totalorder %s292, 63
        %s294 = scalar_select %p293, %s292, 63
        %s295 = smul.addr %s294, 4
        %s296 = scalar_lea.vmem %s1, %s295
        %p297 = pneg %p71
        %p298 = pneg %p68
        %p299 = pneg %p92
        %p300 = pneg %p89
        %p301 = pneg %p113
        %p302 = pneg %p110
        %p303 = pneg %p134
        %p304 = pneg %p131
        %p305 = pneg %p155
        %p306 = pneg %p152
        %p307 = pneg %p176
        %p308 = pneg %p173
        %p309 = pneg %p197
        %p310 = pneg %p194
        %p311 = pneg %p223
        %p312 = pneg %p220
        %s313 = sand.u32 %s210, 1
        %s314 = scalar_lea.sflag [#allocation4], %s313
        %s315 = sand.u32 %s210, 1
        %s316 = smul.addr %s315, 2
        %s317 = scalar_lea.vmem [#allocation3], %s316
        %s318 = smul.u32 32, %s24
        %p319 = scmp.lt.s32.totalorder %s318, 63
        %s320 = scalar_select %p319, %s318, 63
        %s321 = smul.addr %s320, 4
        %s322 = scalar_lea.vmem %s0, %s321
        %s323 = smul.u32 32, %s24
        %s324 = smul.u32 32, %s24
        %p325 = scmp.lt.s32.totalorder %s324, 63
        %s326 = scalar_select %p325, %s324, 63
        %s327 = smul.addr %s326, 4
        %s328 = scalar_lea.vmem %s1, %s327
        %s329 = smul.u32 32, %s24
        %s330 = smul.u32 2, %s24
        %v331 = vld [vmem:[%s322] sm:$0xf]
        %v332 = vld [vmem:[%s322 + $0x4] sm:$0xf]
        %v333 = vld [vmem:[%s322 + $0x8] sm:$0xf]
        %v334 = vld [vmem:[%s322 + $0xc] sm:$0xf]
        %v335 = vld [vmem:[%s322 + $0x10] sm:$0xf]
        %v336 = vld [vmem:[%s322 + $0x14] sm:$0xf]
        %v337 = vld [vmem:[%s322 + $0x18] sm:$0xf]
        %v338 = vld [vmem:[%s322 + $0x1c] sm:$0xf]
        %v339 = vld [vmem:[%s322 + $0x20] sm:$0xf]
        %v340 = vld [vmem:[%s322 + $0x24] sm:$0xf]
        %v341 = vld [vmem:[%s322 + $0x28] sm:$0xf]
        %v342 = vld [vmem:[%s322 + $0x2c] sm:$0xf]
        %v343 = vld [vmem:[%s322 + $0x30] sm:$0xf]
        %v344 = vld [vmem:[%s322 + $0x34] sm:$0xf]
        %v345 = vld [vmem:[%s322 + $0x38] sm:$0xf]
        %v346 = vld [vmem:[%s322 + $0x3c] sm:$0xf]
        %v347 = vld [vmem:[%s322 + $0x40] sm:$0xf]
        %v348 = vld [vmem:[%s322 + $0x44] sm:$0xf]
        %v349 = vld [vmem:[%s322 + $0x48] sm:$0xf]
        %v350 = vld [vmem:[%s322 + $0x4c] sm:$0xf]
        %v351 = vld [vmem:[%s322 + $0x50] sm:$0xf]
        %v352 = vld [vmem:[%s322 + $0x54] sm:$0xf]
        %v353 = vld [vmem:[%s322 + $0x58] sm:$0xf]
        %v354 = vld [vmem:[%s322 + $0x5c] sm:$0xf]
        %v355 = vld [vmem:[%s322 + $0x60] sm:$0xf]
        %v356 = vld [vmem:[%s322 + $0x64] sm:$0xf]
        %v357 = vld [vmem:[%s322 + $0x68] sm:$0xf]
        %v358 = vld [vmem:[%s322 + $0x6c] sm:$0xf]
        %v359 = vld [vmem:[%s322 + $0x70] sm:$0xf]
        %v360 = vld [vmem:[%s322 + $0x74] sm:$0xf]
        %v361 = vld [vmem:[%s322 + $0x78] sm:$0xf]
        %v362 = vld [vmem:[%s322 + $0x7c] sm:$0xf]
        %v363 = vunpack.c.l.bf16 %v331
        %v364 = vunpack.c.l.bf16 %v332
        %v365 = vunpack.c.l.bf16 %v333
        %v366 = vunpack.c.l.bf16 %v334
        %v367 = vunpack.c.l.bf16 %v335
        %v368 = vunpack.c.l.bf16 %v336
        %v369 = vunpack.c.l.bf16 %v337
        %v370 = vunpack.c.l.bf16 %v338
        %v371 = vunpack.c.l.bf16 %v339
        %v372 = vunpack.c.l.bf16 %v340
        %v373 = vunpack.c.l.bf16 %v341
        %v374 = vunpack.c.l.bf16 %v342
        %v375 = vunpack.c.l.bf16 %v343
        %v376 = vunpack.c.l.bf16 %v344
        %v377 = vunpack.c.l.bf16 %v345
        %v378 = vunpack.c.l.bf16 %v346
        %v379 = vunpack.c.l.bf16 %v347
        %v380 = vunpack.c.l.bf16 %v348
        %v381 = vunpack.c.l.bf16 %v349
        %v382 = vunpack.c.l.bf16 %v350
        %v383 = vunpack.c.l.bf16 %v351
        %v384 = vunpack.c.l.bf16 %v352
        %v385 = vunpack.c.l.bf16 %v353
        %v386 = vunpack.c.l.bf16 %v354
        %v387 = vunpack.c.l.bf16 %v355
        %v388 = vunpack.c.l.bf16 %v356
        %v389 = vunpack.c.l.bf16 %v357
        %v390 = vunpack.c.l.bf16 %v358
        %v391 = vunpack.c.l.bf16 %v359
        %v392 = vunpack.c.l.bf16 %v360
        %v393 = vunpack.c.l.bf16 %v361
        %v394 = vunpack.c.l.bf16 %v362
        %v395 = vld [vmem:[%s328] sm:$0xf]
        %v396 = vld [vmem:[%s328 + $0x4] sm:$0xf]
        %v397 = vld [vmem:[%s328 + $0x8] sm:$0xf]
        %v398 = vld [vmem:[%s328 + $0xc] sm:$0xf]
        %v399 = vld [vmem:[%s328 + $0x10] sm:$0xf]
        %v400 = vld [vmem:[%s328 + $0x14] sm:$0xf]
        %v401 = vld [vmem:[%s328 + $0x18] sm:$0xf]
        %v402 = vld [vmem:[%s328 + $0x1c] sm:$0xf]
        %v403 = vld [vmem:[%s328 + $0x20] sm:$0xf]
        %v404 = vld [vmem:[%s328 + $0x24] sm:$0xf]
        %v405 = vld [vmem:[%s328 + $0x28] sm:$0xf]
        %v406 = vld [vmem:[%s328 + $0x2c] sm:$0xf]
        %v407 = vld [vmem:[%s328 + $0x30] sm:$0xf]
        %v408 = vld [vmem:[%s328 + $0x34] sm:$0xf]
        %v409 = vld [vmem:[%s328 + $0x38] sm:$0xf]
        %v410 = vld [vmem:[%s328 + $0x3c] sm:$0xf]
        %v411 = vld [vmem:[%s328 + $0x40] sm:$0xf]
        %v412 = vld [vmem:[%s328 + $0x44] sm:$0xf]
        %v413 = vld [vmem:[%s328 + $0x48] sm:$0xf]
        %v414 = vld [vmem:[%s328 + $0x4c] sm:$0xf]
        %v415 = vld [vmem:[%s328 + $0x50] sm:$0xf]
        %v416 = vld [vmem:[%s328 + $0x54] sm:$0xf]
        %v417 = vld [vmem:[%s328 + $0x58] sm:$0xf]
        %v418 = vld [vmem:[%s328 + $0x5c] sm:$0xf]
        %v419 = vld [vmem:[%s328 + $0x60] sm:$0xf]
        %v420 = vld [vmem:[%s328 + $0x64] sm:$0xf]
        %v421 = vld [vmem:[%s328 + $0x68] sm:$0xf]
        %v422 = vld [vmem:[%s328 + $0x6c] sm:$0xf]
        %v423 = vld [vmem:[%s328 + $0x70] sm:$0xf]
        %v424 = vld [vmem:[%s328 + $0x74] sm:$0xf]
        %v425 = vld [vmem:[%s328 + $0x78] sm:$0xf]
        %v426 = vld [vmem:[%s328 + $0x7c] sm:$0xf]
        %v427 = vunpack.c.l.bf16 %v395
        %v428 = vunpack.c.l.bf16 %v396
        %v429 = vunpack.c.l.bf16 %v397
        %v430 = vunpack.c.l.bf16 %v398
        %v431 = vunpack.c.l.bf16 %v399
        %v432 = vunpack.c.l.bf16 %v400
        %v433 = vunpack.c.l.bf16 %v401
        %v434 = vunpack.c.l.bf16 %v402
        %v435 = vunpack.c.l.bf16 %v403
        %v436 = vunpack.c.l.bf16 %v404
        %v437 = vunpack.c.l.bf16 %v405
        %v438 = vunpack.c.l.bf16 %v406
        %v439 = vunpack.c.l.bf16 %v407
        %v440 = vunpack.c.l.bf16 %v408
        %v441 = vunpack.c.l.bf16 %v409
        %v442 = vunpack.c.l.bf16 %v410
        %v443 = vunpack.c.l.bf16 %v411
        %v444 = vunpack.c.l.bf16 %v412
        %v445 = vunpack.c.l.bf16 %v413
        %v446 = vunpack.c.l.bf16 %v414
        %v447 = vunpack.c.l.bf16 %v415
        %v448 = vunpack.c.l.bf16 %v416
        %v449 = vunpack.c.l.bf16 %v417
        %v450 = vunpack.c.l.bf16 %v418
        %v451 = vunpack.c.l.bf16 %v419
        %v452 = vunpack.c.l.bf16 %v420
        %v453 = vunpack.c.l.bf16 %v421
        %v454 = vunpack.c.l.bf16 %v422
        %v455 = vunpack.c.l.bf16 %v423
        %v456 = vunpack.c.l.bf16 %v424
        %v457 = vunpack.c.l.bf16 %v425
        %v458 = vunpack.c.l.bf16 %v426
        %v459 = vmul.f32 %v363, %v427
        %v460 = vmul.f32 %v364, %v428
        %v461 = vmul.f32 %v365, %v429
        %v462 = vmul.f32 %v366, %v430
        %v463 = vmul.f32 %v367, %v431
        %v464 = vmul.f32 %v368, %v432
        %v465 = vmul.f32 %v369, %v433
        %v466 = vmul.f32 %v370, %v434
        %v467 = vmul.f32 %v371, %v435
        %v468 = vmul.f32 %v372, %v436
        %v469 = vmul.f32 %v373, %v437
        %v470 = vmul.f32 %v374, %v438
        %v471 = vmul.f32 %v375, %v439
        %v472 = vmul.f32 %v376, %v440
        %v473 = vmul.f32 %v377, %v441
        %v474 = vmul.f32 %v378, %v442
        %v475 = vmul.f32 %v379, %v443
        %v476 = vmul.f32 %v380, %v444
        %v477 = vmul.f32 %v381, %v445
        %v478 = vmul.f32 %v382, %v446
        %v479 = vmul.f32 %v383, %v447
        %v480 = vmul.f32 %v384, %v448
        %v481 = vmul.f32 %v385, %v449
        %v482 = vmul.f32 %v386, %v450
        %v483 = vmul.f32 %v387, %v451
        %v484 = vmul.f32 %v388, %v452
        %v485 = vmul.f32 %v389, %v453
        %v486 = vmul.f32 %v390, %v454
        %v487 = vmul.f32 %v391, %v455
        %v488 = vmul.f32 %v392, %v456
        %v489 = vmul.f32 %v393, %v457
        %v490 = vmul.f32 %v394, %v458
        %v491 = vld [vmem:[%s2] sm:$0xff]
        %v492 = vld [vmem:[%s2 + $0x8] sm:$0xff]
        %v493 = vld [vmem:[%s2 + $0x10] sm:$0xff]
        %v494 = vld [vmem:[%s2 + $0x18] sm:$0xff]
        %v495 = vld [vmem:[%s3] sm:$0xff]
        %v496 = vld [vmem:[%s3 + $0x8] sm:$0xff]
        %v497 = vld [vmem:[%s3 + $0x10] sm:$0xff]
        %v498 = vld [vmem:[%s3 + $0x18] sm:$0xff]
        %500 = vset.pattern.permute.xlu0 0
        %501 = vperm.xlu0 %500, %v495
        %v502 = vpop.permute.xlu0 %501
        %505 = vset.pattern.permute.xlu0 0
        %506 = vperm.xlu0 %505, %v496
        %v507 = vpop.permute.xlu0 %506
        %510 = vset.pattern.permute.xlu0 0
        %511 = vperm.xlu0 %510, %v497
        %v512 = vpop.permute.xlu0 %511
        %515 = vset.pattern.permute.xlu0 0
        %516 = vperm.xlu0 %515, %v498
        %v517 = vpop.permute.xlu0 %516
        %vm519 = vcmask 261120
        %v521 = vsel %vm519, %v491, 0
        %v524 = vsel %vm519, %v492, 0
        %v527 = vsel %vm519, %v493, 0
        %v530 = vsel %vm519, %v494, 0
        %v533 = vsel %vm519, %v459, 0
        %v536 = vsel %vm519, %v460, 0
        %v539 = vsel %vm519, %v461, 0
        %v542 = vsel %vm519, %v462, 0
        %v545 = vsel %vm519, %v463, 0
        %v548 = vsel %vm519, %v464, 0
        %v551 = vsel %vm519, %v465, 0
        %v554 = vsel %vm519, %v466, 0
        %v557 = vsel %vm519, %v467, 0
        %v560 = vsel %vm519, %v468, 0
        %v563 = vsel %vm519, %v469, 0
        %v566 = vsel %vm519, %v470, 0
        %v569 = vsel %vm519, %v471, 0
        %v572 = vsel %vm519, %v472, 0
        %v575 = vsel %vm519, %v473, 0
        %v578 = vsel %vm519, %v474, 0
        %v581 = vsel %vm519, %v475, 0
        %v584 = vsel %vm519, %v476, 0
        %v587 = vsel %vm519, %v477, 0
        %v590 = vsel %vm519, %v478, 0
        %v593 = vsel %vm519, %v479, 0
        %v596 = vsel %vm519, %v480, 0
        %v599 = vsel %vm519, %v481, 0
        %v602 = vsel %vm519, %v482, 0
        %v605 = vsel %vm519, %v483, 0
        %v608 = vsel %vm519, %v484, 0
        %v611 = vsel %vm519, %v485, 0
        %v614 = vsel %vm519, %v486, 0
        %v617 = vsel %vm519, %v487, 0
        %v620 = vsel %vm519, %v488, 0
        %v623 = vsel %vm519, %v489, 0
        %v626 = vsel %vm519, %v490, 0
        %628 = vmatprep.subr.mxu0 0.0
        %629 = vmatpush1.xpose.msra.mxu0 %v533
        %630 = vmatprep.subr.mxu0 0.0
        %631 = vmatpush1.xpose.msra.mxu0 %v536
        %632 = vmatprep.subr.mxu0 0.0
        %633 = vmatpush1.xpose.msra.mxu0 %v539
        %634 = vmatprep.subr.mxu0 0.0
        %635 = vmatpush1.xpose.msra.mxu0 %v542
        %636 = vmatprep.subr.mxu0 0.0
        %637 = vmatpush1.xpose.msra.mxu0 %v545
        %638 = vmatprep.subr.mxu0 0.0
        %639 = vmatpush1.xpose.msra.mxu0 %v548
        %640 = vmatprep.subr.mxu0 0.0
        %641 = vmatpush1.xpose.msra.mxu0 %v551
        %642 = vmatprep.subr.mxu0 0.0
        %643 = vmatpush1.xpose.msra.mxu0 %v554
        %644 = vmatprep.subr.mxu0 0.0
        %645 = vmatpush1.xpose.msra.mxu0 %v557
        %646 = vmatprep.subr.mxu0 0.0
        %647 = vmatpush1.xpose.msra.mxu0 %v560
        %648 = vmatprep.subr.mxu0 0.0
        %649 = vmatpush1.xpose.msra.mxu0 %v563
        %650 = vmatprep.subr.mxu0 0.0
        %651 = vmatpush1.xpose.msra.mxu0 %v566
        %652 = vmatprep.subr.mxu0 0.0
        %653 = vmatpush1.xpose.msra.mxu0 %v569
        %654 = vmatprep.subr.mxu0 0.0
        %655 = vmatpush1.xpose.msra.mxu0 %v572
        %656 = vmatprep.subr.mxu0 0.0
        %657 = vmatpush1.xpose.msra.mxu0 %v575
        %658 = vmatprep.subr.mxu0 0.0
        %659 = vmatpush1.xpose.msra.mxu0 %v578
        %660 = vmatprep.subr.mxu0 0.0
        %661 = vmatpush1.xpose.msra.mxu0 %v581
        %662 = vmatprep.subr.mxu0 0.0
        %663 = vmatpush1.xpose.msra.mxu0 %v584
        %664 = vmatprep.subr.mxu0 0.0
        %665 = vmatpush1.xpose.msra.mxu0 %v587
        %666 = vmatprep.subr.mxu0 0.0
        %667 = vmatpush1.xpose.msra.mxu0 %v590
        %668 = vmatprep.subr.mxu0 0.0
        %669 = vmatpush1.xpose.msra.mxu0 %v593
        %670 = vmatprep.subr.mxu0 0.0
        %671 = vmatpush1.xpose.msra.mxu0 %v596
        %672 = vmatprep.subr.mxu0 0.0
        %673 = vmatpush1.xpose.msra.mxu0 %v599
        %674 = vmatprep.subr.mxu0 0.0
        %675 = vmatpush1.xpose.msra.mxu0 %v602
        %676 = vmatprep.subr.mxu0 0.0
        %677 = vmatpush1.xpose.msra.mxu0 %v605
        %678 = vmatprep.subr.mxu0 0.0
        %679 = vmatpush1.xpose.msra.mxu0 %v608
        %680 = vmatprep.subr.mxu0 0.0
        %681 = vmatpush1.xpose.msra.mxu0 %v611
        %682 = vmatprep.subr.mxu0 0.0
        %683 = vmatpush1.xpose.msra.mxu0 %v614
        %684 = vmatprep.subr.mxu0 0.0
        %685 = vmatpush1.xpose.msra.mxu0 %v617
        %686 = vmatprep.subr.mxu0 0.0
        %687 = vmatpush1.xpose.msra.mxu0 %v620
        %688 = vmatprep.subr.mxu0 0.0
        %689 = vmatpush1.xpose.msra.mxu0 %v623
        %690 = vmatprep.subr.mxu0 0.0
        %691 = vmatpush1.xpose.msra.mxu0 %v626
        %692 = vmatprep.mubr.f32.mxu0 0.0
        %693 = vmatmul.mubr.f32.gmra.mrb[0].mxu0 %v521
        %v694 = vpop.f32.mrb[0].mxu0
        %v695 = vadd.f32 %v502, %v694
        %v696 = vpop.f32.mrb[0].mxu0
        %v697 = vadd.f32 %v502, %v696
        %698 = vmatprep.mubr.f32.mxu0 0.0
        %699 = vmatmul.mubr.f32.gmra.mrb[0].mxu0 %v524
        %v700 = vpop.f32.mrb[0].mxu0
        %v701 = vadd.f32 %v507, %v700
        %v702 = vpop.f32.mrb[0].mxu0
        %v703 = vadd.f32 %v507, %v702
        %704 = vmatprep.mubr.f32.mxu0 0.0
        %705 = vmatmul.mubr.f32.gmra.mrb[0].mxu0 %v527
        %v706 = vpop.f32.mrb[0].mxu0
        %v707 = vadd.f32 %v512, %v706
        %v708 = vpop.f32.mrb[0].mxu0
        %v709 = vadd.f32 %v512, %v708
        %710 = vmatprep.mubr.f32.mxu0 0.0
        %711 = vmatmul.mubr.f32.gmra.mrb[0].mxu0 %v530
        %v712 = vpop.f32.mrb[0].mxu0
        %v713 = vadd.f32 %v517, %v712
        %v714 = vpop.f32.mrb[0].mxu0
        %v715 = vadd.f32 %v517, %v714
        %716 = vdwg.mxu0
        %v717 = vmax.f32 %v695, 0.0
        %v718 = vmax.f32 %v697, 0.0
        %v719 = vmax.f32 %v701, 0.0
        %v720 = vmax.f32 %v703, 0.0
        %v721 = vmax.f32 %v707, 0.0
        %v722 = vmax.f32 %v709, 0.0
        %v723 = vmax.f32 %v713, 0.0
        %v724 = vmax.f32 %v715, 0.0
        %v725 = vld [vmem:[%s4] sm:$0xff]
        %v726 = vld [vmem:[%s4 + $0x8] sm:$0xff]
        %v727 = vld [vmem:[%s4 + $0x10] sm:$0xff]
        %v728 = vld [vmem:[%s4 + $0x18] sm:$0xff]
        %v729 = vld [vmem:[%s5] sm:$0xff]
        %v730 = vld [vmem:[%s5 + $0x8] sm:$0xff]
        %v731 = vld [vmem:[%s5 + $0x10] sm:$0xff]
        %v732 = vld [vmem:[%s5 + $0x18] sm:$0xff]
        %734 = vset.pattern.permute.xlu0 0
        %735 = vperm.xlu0 %734, %v729
        %v736 = vpop.permute.xlu0 %735
        %739 = vset.pattern.permute.xlu0 0
        %740 = vperm.xlu0 %739, %v730
        %v741 = vpop.permute.xlu0 %740
        %744 = vset.pattern.permute.xlu0 0
        %745 = vperm.xlu0 %744, %v731
        %v746 = vpop.permute.xlu0 %745
        %749 = vset.pattern.permute.xlu0 0
        %750 = vperm.xlu0 %749, %v732
        %v751 = vpop.permute.xlu0 %750
        %v754 = vsel %vm519, %v725, 0
        %v757 = vsel %vm519, %v726, 0
        %v760 = vsel %vm519, %v727, 0
        %v763 = vsel %vm519, %v728, 0
        %765 = vmatprep.subr.mxu0 %v718
        %766 = vmatpush1.msra.mxu0 %v717
        %767 = vmatprep.subr.mxu0 %v720
        %768 = vmatpush1.msra.mxu0 %v719
        %769 = vmatprep.subr.mxu0 %v722
        %770 = vmatpush1.msra.mxu0 %v721
        %771 = vmatprep.subr.mxu0 %v724
        %772 = vmatpush1.msra.mxu0 %v723
        %773 = vmatprep.subr.mxu0 0.0
        %774 = vmatpush1.msra.mxu0 0.0
        %775 = vmatprep.subr.mxu0 0.0
        %776 = vmatpush1.msra.mxu0 0.0
        %777 = vmatprep.subr.mxu0 0.0
        %778 = vmatpush1.msra.mxu0 0.0
        %779 = vmatprep.subr.mxu0 0.0
        %780 = vmatpush1.msra.mxu0 0.0
        %781 = vmatprep.subr.mxu0 0.0
        %782 = vmatpush1.msra.mxu0 0.0
        %783 = vmatprep.subr.mxu0 0.0
        %784 = vmatpush1.msra.mxu0 0.0
        %785 = vmatprep.subr.mxu0 0.0
        %786 = vmatpush1.msra.mxu0 0.0
        %787 = vmatprep.subr.mxu0 0.0
        %788 = vmatpush1.msra.mxu0 0.0
        %789 = vmatprep.subr.mxu0 0.0
        %790 = vmatpush1.msra.mxu0 0.0
        %791 = vmatprep.subr.mxu0 0.0
        %792 = vmatpush1.msra.mxu0 0.0
        %793 = vmatprep.subr.mxu0 0.0
        %794 = vmatpush1.msra.mxu0 0.0
        %795 = vmatprep.subr.mxu0 0.0
        %796 = vmatpush1.msra.mxu0 0.0
        %797 = vmatprep.subr.mxu0 0.0
        %798 = vmatpush1.msra.mxu0 0.0
        %799 = vmatprep.subr.mxu0 0.0
        %800 = vmatpush1.msra.mxu0 0.0
        %801 = vmatprep.subr.mxu0 0.0
        %802 = vmatpush1.msra.mxu0 0.0
        %803 = vmatprep.subr.mxu0 0.0
        %804 = vmatpush1.msra.mxu0 0.0
        %805 = vmatprep.subr.mxu0 0.0
        %806 = vmatpush1.msra.mxu0 0.0
        %807 = vmatprep.subr.mxu0 0.0
        %808 = vmatpush1.msra.mxu0 0.0
        %809 = vmatprep.subr.mxu0 0.0
        %810 = vmatpush1.msra.mxu0 0.0
        %811 = vmatprep.subr.mxu0 0.0
        %812 = vmatpush1.msra.mxu0 0.0
        %813 = vmatprep.subr.mxu0 0.0
        %814 = vmatpush1.msra.mxu0 0.0
        %815 = vmatprep.subr.mxu0 0.0
        %816 = vmatpush1.msra.mxu0 0.0
        %817 = vmatprep.subr.mxu0 0.0
        %818 = vmatpush1.msra.mxu0 0.0
        %819 = vmatprep.subr.mxu0 0.0
        %820 = vmatpush1.msra.mxu0 0.0
        %821 = vmatprep.subr.mxu0 0.0
        %822 = vmatpush1.msra.mxu0 0.0
        %823 = vmatprep.subr.mxu0 0.0
        %824 = vmatpush1.msra.mxu0 0.0
        %825 = vmatprep.subr.mxu0 0.0
        %826 = vmatpush1.msra.mxu0 0.0
        %827 = vmatprep.subr.mxu0 0.0
        %828 = vmatpush1.msra.mxu0 0.0
        %829 = vmatprep.mubr.f32.mxu0 0.0
        %830 = vmatmul.mubr.f32.gmra.mrb[0].mxu0 %v754
        %v831 = vpop.f32.mrb[0].mxu0
        %v832 = vadd.f32 %v736, %v831
        %v833 = vpop.f32.mrb[0].mxu0
        %v834 = vadd.f32 %v736, %v833
        %835 = vmatprep.mubr.f32.mxu0 0.0
        %836 = vmatmul.mubr.f32.gmra.mrb[0].mxu0 %v757
        %v837 = vpop.f32.mrb[0].mxu0
        %v838 = vadd.f32 %v741, %v837
        %v839 = vpop.f32.mrb[0].mxu0
        %v840 = vadd.f32 %v741, %v839
        %841 = vmatprep.mubr.f32.mxu0 0.0
        %842 = vmatmul.mubr.f32.gmra.mrb[0].mxu0 %v760
        %v843 = vpop.f32.mrb[0].mxu0
        %v844 = vadd.f32 %v746, %v843
        %v845 = vpop.f32.mrb[0].mxu0
        %v846 = vadd.f32 %v746, %v845
        %847 = vmatprep.mubr.f32.mxu0 0.0
        %848 = vmatmul.mubr.f32.gmra.mrb[0].mxu0 %v763
        %v849 = vpop.f32.mrb[0].mxu0
        %v850 = vadd.f32 %v751, %v849
        %v851 = vpop.f32.mrb[0].mxu0
        %v852 = vadd.f32 %v751, %v851
        %853 = vdwg.mxu0
        %v854 = vmax.f32 %v832, 0.0
        %v855 = vmax.f32 %v834, 0.0
        %v856 = vmax.f32 %v838, 0.0
        %v857 = vmax.f32 %v840, 0.0
        %v858 = vmax.f32 %v844, 0.0
        %v859 = vmax.f32 %v846, 0.0
        %v860 = vmax.f32 %v850, 0.0
        %v861 = vmax.f32 %v852, 0.0
        %v862 = vld [vmem:[%s6] sm:$0x1]
        %v863 = vld [vmem:[#allocation2] sm:$0x1]
        %865 = vset.pattern.permute.xlu0 0
        %866 = vperm.xlu0 %865, %v863
        %v867 = vpop.permute.xlu0 %866
        %v869 = vlaneseq
        %v870 = vshrl.u32 %v869, 7
        %v871 = vsub.s32 0, %v870
        %v872 = vrot.slane %v867, %v871
        %v874 = vsel %vm519, %v862, 0
        %876 = vmatprep.subr.mxu0 %v855
        %877 = vmatpush1.msra.mxu0 %v854
        %878 = vmatprep.subr.mxu0 %v857
        %879 = vmatpush1.msra.mxu0 %v856
        %880 = vmatprep.subr.mxu0 %v859
        %881 = vmatpush1.msra.mxu0 %v858
        %882 = vmatprep.subr.mxu0 %v861
        %883 = vmatpush1.msra.mxu0 %v860
        %884 = vmatprep.subr.mxu0 0.0
        %885 = vmatpush1.msra.mxu0 0.0
        %886 = vmatprep.subr.mxu0 0.0
        %887 = vmatpush1.msra.mxu0 0.0
        %888 = vmatprep.subr.mxu0 0.0
        %889 = vmatpush1.msra.mxu0 0.0
        %890 = vmatprep.subr.mxu0 0.0
        %891 = vmatpush1.msra.mxu0 0.0
        %892 = vmatprep.subr.mxu0 0.0
        %893 = vmatpush1.msra.mxu0 0.0
        %894 = vmatprep.subr.mxu0 0.0
        %895 = vmatpush1.msra.mxu0 0.0
        %896 = vmatprep.subr.mxu0 0.0
        %897 = vmatpush1.msra.mxu0 0.0
        %898 = vmatprep.subr.mxu0 0.0
        %899 = vmatpush1.msra.mxu0 0.0
        %900 = vmatprep.subr.mxu0 0.0
        %901 = vmatpush1.msra.mxu0 0.0
        %902 = vmatprep.subr.mxu0 0.0
        %903 = vmatpush1.msra.mxu0 0.0
        %904 = vmatprep.subr.mxu0 0.0
        %905 = vmatpush1.msra.mxu0 0.0
        %906 = vmatprep.subr.mxu0 0.0
        %907 = vmatpush1.msra.mxu0 0.0
        %908 = vmatprep.subr.mxu0 0.0
        %909 = vmatpush1.msra.mxu0 0.0
        %910 = vmatprep.subr.mxu0 0.0
        %911 = vmatpush1.msra.mxu0 0.0
        %912 = vmatprep.subr.mxu0 0.0
        %913 = vmatpush1.msra.mxu0 0.0
        %914 = vmatprep.subr.mxu0 0.0
        %915 = vmatpush1.msra.mxu0 0.0
        %916 = vmatprep.subr.mxu0 0.0
        %917 = vmatpush1.msra.mxu0 0.0
        %918 = vmatprep.subr.mxu0 0.0
        %919 = vmatpush1.msra.mxu0 0.0
        %920 = vmatprep.subr.mxu0 0.0
        %921 = vmatpush1.msra.mxu0 0.0
        %922 = vmatprep.subr.mxu0 0.0
        %923 = vmatpush1.msra.mxu0 0.0
        %924 = vmatprep.subr.mxu0 0.0
        %925 = vmatpush1.msra.mxu0 0.0
        %926 = vmatprep.subr.mxu0 0.0
        %927 = vmatpush1.msra.mxu0 0.0
        %928 = vmatprep.subr.mxu0 0.0
        %929 = vmatpush1.msra.mxu0 0.0
        %930 = vmatprep.subr.mxu0 0.0
        %931 = vmatpush1.msra.mxu0 0.0
        %932 = vmatprep.subr.mxu0 0.0
        %933 = vmatpush1.msra.mxu0 0.0
        %934 = vmatprep.subr.mxu0 0.0
        %935 = vmatpush1.msra.mxu0 0.0
        %936 = vmatprep.subr.mxu0 0.0
        %937 = vmatpush1.msra.mxu0 0.0
        %938 = vmatprep.subr.mxu0 0.0
        %939 = vmatpush1.msra.mxu0 0.0
        %940 = vmatprep.mubr.f32.mxu0 0.0
        %941 = vmatmul.mubr.f32.gmra.mrb[0].mxu0 %v874
        %v942 = vpop.f32.mrb[0].mxu0
        %v943 = vadd.f32 %v872, %v942
        %v944 = vpop.f32.mrb[0].mxu0
        %v945 = vadd.f32 %v872, %v944
        %946 = vdwg.mxu0
        %v947 = vsub.f32 0.0, %v943
        %v948 = vsub.f32 0.0, %v945
        %v949 = vmul.f32 %v947, 1.442695
        %v950 = vpow.pop %v949
        %v951 = vmul.f32 %v948, 1.442695
        %v952 = vpow.pop %v951
        %v953 = vadd.f32 %v950, 1.0
        %v954 = vadd.f32 %v952, 1.0
        %v955 = vrcp.pop %v953
        %v956 = vrcp.pop %v954
        %v959 = vcombine.low %v955, %v956
        %v961 = vunpack.c.l.s4 1966171168
        %v962 = vunpack.c.0.s8 %v961
        %v963 = vlaneseq
        %v964 = vshrl.u32 %v963, 7
        %v965 = vsub.s32 %v962, %v964
        %v966 = vrot.slane %v959, %v965
        %v968 = vunpack.c.l.s4 1966171168
        %v969 = vunpack.c.0.s8 %v968
        %v970 = vlaneseq
        %v971 = vshrl.u32 %v970, 7
        %v972 = vsub.s32 %v969, %v971
        %v973 = vrot.slane %v966, %v972
        %v975 = vlaneseq
        %vm976 = vcmp.ge.s32.totalorder %v975, 0
        %vm977 = vcmp.lt.s32.totalorder %v975, 256
        %vm978 = vmand %vm976, %vm977
        %979 = vst.msk [vmem:[%s317] sm:$0x3] %vm978, %v973
        %s980 = sand.u32 %s210, 1
        %s981 = scalar_lea.sflag [#allocation4], %s980
        %s982 = sand.u32 %s210, 1
        %s983 = smul.addr %s982, 2
        %s984 = scalar_lea.vmem [#allocation3], %s983
        // Predicated region
        $region53: #{tpu_custom_call.1} parent=51 // pred_check
          %p985 = pneg %p220
        $region54: #{tpu_custom_call.1} parent=51 // pred_check_branch
          %987 = sbr.rel (%p985) target = $region56
        $region55: #{tpu_custom_call.1} parent=51 // pred_region
          %s988 = smul.u32 2, %s24
          %s990 = ssub.s32 32, 32
          %991 = vsyncadd %s981, %s990
          %s992 = smul.addr %s988, 16
          %s993 = scalar_lea.hbm %s8, %s992
          %s995 = sshll.u32 %s984, 4
          %s996 = int_to_ptr.vmem [resolvable:$true] %s995
          %998 = dma.vmem_to_hbm [thread:$0]  %s996, 32, %s993, %s981
        $region56: #{tpu_custom_call.1} parent=51 // pred_fallthru
          _
      $region52: #{tpu_custom_call.1} parent=5 // pred_fallthru
        _
      %p999 = scmp.le.s32.totalorder 2, %s19
      // Predicated region
      $region57: #{tpu_custom_call.1} parent=5 // pred_check
        %p1000 = pneg %p999
      $region58: #{tpu_custom_call.1} parent=5 // pred_check_branch
        %1002 = sbr.rel (%p1000) target = $region60
      $region59: #{tpu_custom_call.1} parent=5 // pred_region
        %s1003 = ssub.s32 %s19, 2
        // Predicated region
        $region61: #{tpu_custom_call.1} parent=59 // pred_check
          %p1004 = pneg %p226
        $region62: #{tpu_custom_call.1} parent=59 // pred_check_branch
          %1006 = sbr.rel (%p1004) target = $region64
        $region63: #{tpu_custom_call.1} parent=59 // pred_region
          %s1007 = sand.u32 %s211, 1
          %s1008 = scalar_lea.sflag [#allocation4], %s1007
          %s1009 = sand.u32 %s211, 1
          %s1010 = smul.addr %s1009, 2
          %s1011 = scalar_lea.vmem [#allocation3], %s1010
          %1012 = dma.done %s1008, 32
        $region64: #{tpu_custom_call.1} parent=59 // pred_fallthru
          _
      $region60: #{tpu_custom_call.1} parent=5 // pred_fallthru
        _
    $region6: #{tpu_custom_call.1} parent=1 // loop_footer
      %s23 = sadd.s32 1, %s19
    $region7: #{tpu_custom_call.1} parent=1 // loop_footer_branch
      %18 = sbr.rel target = $region3
    $region8: #{tpu_custom_call.1} parent=1 // loop_exit
      _
    %1013 = vsyncpa [#allocation4], 1
    %s1014 = scalar_lea.sflag [#allocation4], 1
    %1015 = vsyncpa %s1014, 1

</llo_original>
